<compile_context>
chip_gen: v7x
topology: tpu7x:2x2x1
jax: 0.10.0
libtpu: 0.0.40
codegen_flags: <defaults>
</compile_context>

<pallas_src>
import functools

import jax
import jax.numpy as jnp
from jax.experimental import pallas as pl
from jax.experimental.pallas import tpu as pltpu


def _joint_table_kernel(wA_row_ref, wA_col_ref, wBA_ref, t_ref):
    """One-time O(N^2) precompute: T[a, b] = log_softmax(w_A)[a] + log_softmax(w_BA[a])[b]."""
    wA_row = wA_row_ref[...]          # (1, N) float32
    wA_col = wA_col_ref[...]          # (N, 1) float32 (same data, column layout)
    wBA = wBA_ref[...]                # (N, N) float32

    # log-sum-exp of w_A (scalar); lane reductions only.
    mA = jnp.max(wA_row, axis=1, keepdims=True)                                   # (1, 1)
    lseA = mA + jnp.log(jnp.sum(jnp.exp(wA_row - mA), axis=1, keepdims=True))     # (1, 1)
    logpA_col = wA_col - lseA                                                     # (N, 1)

    # Row-wise log_softmax of w_BA (conditioning value A indexes the row).
    m = jnp.max(wBA, axis=1, keepdims=True)                                       # (N, 1)
    lseBA = m + jnp.log(jnp.sum(jnp.exp(wBA - m), axis=1, keepdims=True))         # (N, 1)

    t_ref[...] = (wBA - lseBA) + logpA_col                                        # (N, N)


def _a2b_lookup_kernel(idx_ref, tbl_ref, o_ref, *, n_cat):
    """Per batch tile: out[j] = T_flat[a[j]*N + b[j]], batch on the lane axis (lane-dense)."""
    idx = idx_ref[...]                     # (2, TB) int32: row 0 = A, row 1 = B
    a = idx[0:1, :]                        # (1, TB)
    b = idx[1:2, :]                        # (1, TB)
    flat = a * n_cat + b                   # (1, TB) flattened joint index a*N + b

    tbl = tbl_ref[...]                     # (N*N, 1) float32, flat index on the sublane axis
    nn = tbl.shape[0]
    tb = idx.shape[1]

    row = jax.lax.broadcasted_iota(jnp.int32, (nn, tb), 0)        # (N*N, TB) sublane iota
    sel = jnp.where(row == flat, tbl, jnp.float32(0.0))           # (N*N, TB) masked table
    o_ref[...] = jnp.sum(sel, axis=0, keepdims=True)              # (1, TB) lane-dense store


def model_a2b(inputs, w_A, w_BA):
    """inputs: (batch, 2) int; w_A: (N,); w_BA: (N, N). Returns (batch,) float32 log-joint."""
    B = inputs.shape[0]
    N = w_A.shape[0]

    wA_row = w_A.reshape(1, N).astype(jnp.float32)
    wA_col = w_A.reshape(N, 1).astype(jnp.float32)
    wBA = w_BA.astype(jnp.float32)

    # --- One-time O(N^2) joint log-prob table (keeps f32 precision; no bf16 downcast). ---
    table = pl.pallas_call(
        _joint_table_kernel,
        out_shape=jax.ShapeDtypeStruct((N, N), jnp.float32),
        grid=(1,),
        in_specs=[
            pl.BlockSpec((1, N), lambda i: (0, 0)),
            pl.BlockSpec((N, 1), lambda i: (0, 0)),
            pl.BlockSpec((N, N), lambda i: (0, 0)),
        ],
        out_specs=pl.BlockSpec((N, N), lambda i: (0, 0)),
        compiler_params=pltpu.CompilerParams(dimension_semantics=("arbitrary",)),
    )(wA_row, wA_col, wBA)
    # Flat joint index a*N + b lives on the sublane axis of a (N*N, 1) column.
    table_col = table.reshape(N * N, 1)

    # --- Batch tiling: lane-dense tiles of TB samples (multiple of 128). ---
    # Bound the in-kernel (N*N, TB) select intermediate to ~4 MiB of VMEM so larger N stays
    # valid; for small N this caps at 1024 lanes per tile.
    lane_budget = max(128, (((1 << 20) // max(1, N * N)) // 128) * 128)
    TB = max(128, min(1024, lane_budget, 128 * pl.cdiv(B, 128)))
    G = pl.cdiv(B, TB)
    B_pad = G * TB

    idx = inputs.astype(jnp.int32)
    if B_pad != B:
        idx = jnp.pad(idx, ((0, B_pad - B), (0, 0)))   # pad with valid index 0; sliced off below
    idx_t = idx.T                                       # (2, B_pad): batch on the lane axis

    out = pl.pallas_call(
        functools.partial(_a2b_lookup_kernel, n_cat=N),
        out_shape=jax.ShapeDtypeStruct((1, B_pad), jnp.float32),
        grid=(G,),
        in_specs=[
            pl.BlockSpec((2, TB), lambda i: (0, i)),        # per-tile index DMA (pipelined)
            pl.BlockSpec((N * N, 1), lambda i: (0, 0)),     # constant index -> VMEM-resident
        ],
        out_specs=pl.BlockSpec((1, TB), lambda i: (0, i)),  # lane-dense output tile
        compiler_params=pltpu.CompilerParams(
            dimension_semantics=("parallel",)),             # megacore-shardable on v7x
    )(idx_t, table_col)

    return out[0, :B]


def _reference(inputs, w_A, w_BA):
    a = inputs[:, 0]
    b = inputs[:, 1]
    logpA = jax.nn.log_softmax(w_A)[a]                                   # (batch,)
    logpBA = jax.nn.log_softmax(w_BA[a], axis=-1)
    logpBA = jnp.take_along_axis(logpBA, b[:, None], axis=1)[:, 0]
    return logpA + logpBA


if __name__ == "__main__":
    N = 10
    key = jax.random.PRNGKey(0)
    k_in, k_wA, k_wBA, k_in2 = jax.random.split(key, 4)

    # Deterministic synthetic parameters (module __init__ holds these in sub-modules).
    w_A = jax.random.normal(k_wA, (N,), dtype=jnp.float32)
    w_BA = jax.random.normal(k_wBA, (N, N), dtype=jnp.float32)

    # Small batch (single tile, with padding).
    batch = 8
    inputs = jax.random.randint(k_in, (batch, 2), 0, N, dtype=jnp.int32)
    out = jax.block_until_ready(model_a2b(inputs, w_A, w_BA))
    ref = _reference(inputs, w_A, w_BA)
    assert out.shape == (batch,)
    assert jnp.allclose(out, ref, atol=1e-5, rtol=1e-5)

    # Larger batch exercising multiple grid tiles + padding.
    batch2 = 2500
    inputs2 = jax.random.randint(k_in2, (batch2, 2), 0, N, dtype=jnp.int32)
    out2 = jax.block_until_ready(model_a2b(inputs2, w_A, w_BA))
    ref2 = _reference(inputs2, w_A, w_BA)
    assert out2.shape == (batch2,)
    assert jnp.allclose(out2, ref2, atol=1e-5, rtol=1e-5)

    print("KERNEL_OK")
</pallas_src>

<mosaic_0001>
module attributes {stable_mosaic.version = 11 : i64} {
  func.func @_joint_table_kernel(%arg0: i32, %arg1: memref<1x10xf32, #tpu.memory_space<vmem>>, %arg2: memref<10x1xf32, #tpu.memory_space<vmem>>, %arg3: memref<10x10xf32, #tpu.memory_space<vmem>>, %arg4: memref<10x10xf32, #tpu.memory_space<vmem>>) attributes {dimension_semantics = [#tpu.dimension_semantics<arbitrary>], iteration_bounds = array<i64: 1>, scalar_prefetch = 0 : i64, scratch_operands = 0 : i64, tpu.core_type = #tpu.core_type<tc>, window_params = [{pipeline_mode = #tpu.pipeline_mode<synchronous>, transform_indices = @transform_0, window_bounds = array<i64: 1, 10>}, {pipeline_mode = #tpu.pipeline_mode<synchronous>, transform_indices = @transform_1, window_bounds = array<i64: 10, 1>}, {pipeline_mode = #tpu.pipeline_mode<synchronous>, transform_indices = @transform_2, window_bounds = array<i64: 10, 10>}, {pipeline_mode = #tpu.pipeline_mode<synchronous>, transform_indices = @transform_3, window_bounds = array<i64: 10, 10>}]} {
    %c0 = arith.constant 0 : index
    %c0_0 = arith.constant 0 : index
    %0 = vector.load %arg1[%c0, %c0_0] : memref<1x10xf32, #tpu.memory_space<vmem>>, vector<1x10xf32>
    %c0_1 = arith.constant 0 : index
    %c0_2 = arith.constant 0 : index
    %1 = vector.load %arg2[%c0_1, %c0_2] : memref<10x1xf32, #tpu.memory_space<vmem>>, vector<10x1xf32>
    %c0_3 = arith.constant 0 : index
    %c0_4 = arith.constant 0 : index
    %2 = vector.load %arg3[%c0_3, %c0_4] : memref<10x10xf32, #tpu.memory_space<vmem>>, vector<10x10xf32>
    %cst = arith.constant dense<0xFF800000> : vector<1xf32>
    %3 = vector.multi_reduction <maximumf>, %0, %cst [1] : vector<1x10xf32> to vector<1xf32>
    %4 = vector.shape_cast %3 : vector<1xf32> to vector<1x1xf32>
    %5 = vector.broadcast %4 : vector<1x1xf32> to vector<1x10xf32>
    %6 = arith.subf %0, %5 : vector<1x10xf32>
    %7 = math.exp %6 : vector<1x10xf32>
    %cst_5 = arith.constant dense<0.000000e+00> : vector<1xf32>
    %8 = vector.multi_reduction <add>, %7, %cst_5 [1] : vector<1x10xf32> to vector<1xf32>
    %9 = vector.shape_cast %8 : vector<1xf32> to vector<1x1xf32>
    %10 = math.log %9 : vector<1x1xf32>
    %11 = arith.addf %4, %10 : vector<1x1xf32>
    %12 = vector.broadcast %11 : vector<1x1xf32> to vector<10x1xf32>
    %13 = arith.subf %1, %12 : vector<10x1xf32>
    %cst_6 = arith.constant dense<0xFF800000> : vector<10xf32>
    %14 = vector.multi_reduction <maximumf>, %2, %cst_6 [1] : vector<10x10xf32> to vector<10xf32>
    %15 = vector.shape_cast %14 : vector<10xf32> to vector<10x1xf32>
    %16 = vector.broadcast %15 : vector<10x1xf32> to vector<10x10xf32>
    %17 = arith.subf %2, %16 : vector<10x10xf32>
    %18 = math.exp %17 : vector<10x10xf32>
    %cst_7 = arith.constant dense<0.000000e+00> : vector<10xf32>
    %19 = vector.multi_reduction <add>, %18, %cst_7 [1] : vector<10x10xf32> to vector<10xf32>
    %20 = vector.shape_cast %19 : vector<10xf32> to vector<10x1xf32>
    %21 = math.log %20 : vector<10x1xf32>
    %22 = arith.addf %15, %21 : vector<10x1xf32>
    %23 = vector.broadcast %22 : vector<10x1xf32> to vector<10x10xf32>
    %24 = arith.subf %2, %23 : vector<10x10xf32>
    %25 = vector.broadcast %13 : vector<10x1xf32> to vector<10x10xf32>
    %26 = arith.addf %24, %25 : vector<10x10xf32>
    %c0_8 = arith.constant 0 : index
    %c0_9 = arith.constant 0 : index
    %27 = vector.load %arg4[%c0_8, %c0_9] : memref<10x10xf32, #tpu.memory_space<vmem>>, vector<10x10xf32>
    tpu.vector_store %arg4[%c0_8, %c0_9], %26 {strides = array<i32>} : memref<10x10xf32, #tpu.memory_space<vmem>>, vector<10x10xf32>,
    return
  }
  func.func @transform_0(%arg0: i32) -> (i32, i32) {
    %c0_i32 = arith.constant 0 : i32
    %c0_i32_0 = arith.constant 0 : i32
    %c0_i32_1 = arith.constant 0 : i32
    return %c0_i32, %c0_i32_0 : i32, i32
  }
  func.func @transform_1(%arg0: i32) -> (i32, i32) {
    %c0_i32 = arith.constant 0 : i32
    %c0_i32_0 = arith.constant 0 : i32
    %c0_i32_1 = arith.constant 0 : i32
    return %c0_i32, %c0_i32_0 : i32, i32
  }
  func.func @transform_2(%arg0: i32) -> (i32, i32) {
    %c0_i32 = arith.constant 0 : i32
    %c0_i32_0 = arith.constant 0 : i32
    %c0_i32_1 = arith.constant 0 : i32
    return %c0_i32, %c0_i32_0 : i32, i32
  }
  func.func @transform_3(%arg0: i32) -> (i32, i32) {
    %c0_i32 = arith.constant 0 : i32
    %c0_i32_0 = arith.constant 0 : i32
    %c0_i32_1 = arith.constant 0 : i32
    return %c0_i32, %c0_i32_0 : i32, i32
  }
}

</mosaic_0001>

<llo_original>
// kernel: tpu_custom_call.1
$region0: #{tpu_custom_call.1}
  #allocation0 [shape = 'u32[]', space=smem, size = 0x4, offset = 0x4, fixed_abs, tag = 'smem constant byte address 0x4 - core index']
  #allocation1 [shape = 'u32[144,128]{1,0:T(1,128)}', space=vmem, size = 0x12000, scoped, tag = 'internal scratch']
  %s0 = inlined_call_operand.vmem [shape: f32[1,10], index: 0, kind: input, shape index: {}]
  %s1 = inlined_call_operand.vmem [shape: f32[10,1], index: 1, kind: input, shape index: {}]
  %s2 = inlined_call_operand.vmem [shape: f32[10,10], index: 2, kind: input, shape index: {}]
  %s3 = inlined_call_operand.hbm [shape: f32[10,10], index: 3, kind: output, shape index: {}]
  %s4 = sld [smem:[#allocation0]]
  $region22: #{tpu_custom_call.1} parent=0
    _
  %s6 = ssub.s32 1, %s4
  %s7 = scalar_select 0, %s6, %s4
  $region1: #{tpu_custom_call.1} parent=0
    #allocation2 [shape = 'u8[8192]{0}', space=vmem, size = 0x2000, scoped, tag = 'output window, operand 0, single buffered']
    #allocation3 [shape = 's32[1]{0}', space=sflag, size = 0x4, scoped, tag = 'scoped memory for tpu_custom_call.1']
    %8 = vsyncpa [#allocation3], 0
    // Predicated region
    $region2: #{tpu_custom_call.1} parent=1 // pred_check
      _
    $region3: #{tpu_custom_call.1} parent=1 // pred_check_branch
      %10 = sbr.rel (0) target = $region5
    $region4: #{tpu_custom_call.1} parent=1 // pred_region
      _
    $region5: #{tpu_custom_call.1} parent=1 // pred_fallthru
      _
    // Predicated region
    $region6: #{tpu_custom_call.1} parent=1 // pred_check
      _
    $region7: #{tpu_custom_call.1} parent=1 // pred_check_branch
      %12 = sbr.rel (0) target = $region9
    $region8: #{tpu_custom_call.1} parent=1 // pred_region
      _
    $region9: #{tpu_custom_call.1} parent=1 // pred_fallthru
      _
    // Predicated region
    $region10: #{tpu_custom_call.1} parent=1 // pred_check
      _
    $region11: #{tpu_custom_call.1} parent=1 // pred_check_branch
      %14 = sbr.rel (0) target = $region13
    $region12: #{tpu_custom_call.1} parent=1 // pred_region
      _
    $region13: #{tpu_custom_call.1} parent=1 // pred_fallthru
      _
    %v15 = vld [vmem:[%s0] sm:$0x1]
    %v16 = vld [vmem:[%s1] sm:$0xff]
    %v17 = vld [vmem:[%s1 + $0x8] sm:$0x3]
    %v18 = vld [vmem:[%s2] sm:$0xff]
    %v19 = vld [vmem:[%s2 + $0x8] sm:$0x3]
    %vm20 = vcmask 73728
    %v21 = vsel %vm20, %v15, -inf
    %22 = vmax.xlane.f32.xlu0 %v21
    %v23 = vpop.xlane.xlu0 %22
    %v24 = vsub.f32 %v15, %v23
    %v25 = vmul.f32 %v24, 1.442695
    %v26 = vpow.pop %v25
    %v27 = vsel %vm20, %v26, 0.0
    %28 = vadd.xlane.f32.xlu0 %v27
    %v29 = vpop.xlane.xlu0 %28
    %v30 = vlog2.pop %v29
    %v31 = vmul.f32 %v30, 0.6931472
    %v32 = vadd.f32 %v23, %v31
    %v33 = vlaneseq
    %v34 = vshrl.u32 %v33, 7
    %v35 = vsub.s32 0, %v34
    %v36 = vrot.slane %v32, %v35
    %v37 = vsub.f32 %v16, %v36
    %v38 = vsub.f32 %v17, %v36
    %vm39 = vcmask 80896
    %v40 = vsel %vm39, %v18, -inf
    %41 = vmax.xlane.f32.xlu0 %v40
    %v42 = vpop.xlane.xlu0 %41
    %vm43 = vcmask 74752
    %v44 = vsel %vm43, %v19, -inf
    %45 = vmax.xlane.f32.xlu0 %v44
    %v46 = vpop.xlane.xlu0 %45
    %v47 = vsub.f32 %v18, %v42
    %v48 = vsub.f32 %v19, %v46
    %v49 = vmul.f32 %v47, 1.442695
    %v50 = vpow.pop %v49
    %v51 = vmul.f32 %v48, 1.442695
    %v52 = vpow.pop %v51
    %v53 = vsel %vm39, %v50, 0.0
    %54 = vadd.xlane.f32.xlu0 %v53
    %v55 = vpop.xlane.xlu0 %54
    %v56 = vsel %vm43, %v52, 0.0
    %57 = vadd.xlane.f32.xlu0 %v56
    %v58 = vpop.xlane.xlu0 %57
    %v59 = vlog2.pop %v55
    %v60 = vmul.f32 %v59, 0.6931472
    %v61 = vlog2.pop %v58
    %v62 = vmul.f32 %v61, 0.6931472
    %v63 = vadd.f32 %v42, %v60
    %v64 = vadd.f32 %v46, %v62
    %v65 = vsub.f32 %v18, %v63
    %v66 = vsub.f32 %v19, %v64
    %68 = vset.pattern.permute.xlu0 0
    %69 = vperm.xlu0 %68, %v37
    %v70 = vpop.permute.xlu0 %69
    %73 = vset.pattern.permute.xlu0 0
    %74 = vperm.xlu0 %73, %v38
    %v75 = vpop.permute.xlu0 %74
    %v77 = vadd.f32 %v65, %v70
    %v78 = vadd.f32 %v66, %v75
    %79 = vst.msk [vmem:[#allocation2] sm:$0xff] %vm39, %v77
    %80 = vst.msk [vmem:[#allocation2 + $0x8] sm:$0x3] %vm43, %v78
    // Predicated region
    $region14: #{tpu_custom_call.1} parent=1 // pred_check
      _
    $region15: #{tpu_custom_call.1} parent=1 // pred_check_branch
      %82 = sbr.rel (0) target = $region17
    $region16: #{tpu_custom_call.1} parent=1 // pred_region
      %s84 = ssub.s32 256, 256
      %85 = vsyncadd [#allocation3], %s84
      %s86 = sshll.u32 [#allocation2], 4
      %s87 = int_to_ptr.vmem [resolvable:$true] %s86
      %92 = dma.vmem_to_hbm [thread:$0]  %s87, 256, %s3, [#allocation3], 128, 128, 8
    $region17: #{tpu_custom_call.1} parent=1 // pred_fallthru
      _
    // Predicated region
    $region18: #{tpu_custom_call.1} parent=1 // pred_check
      _
    $region19: #{tpu_custom_call.1} parent=1 // pred_check_branch
      %94 = sbr.rel (0) target = $region21
    $region20: #{tpu_custom_call.1} parent=1 // pred_region
      %95 = dma.done [#allocation3], 256
    $region21: #{tpu_custom_call.1} parent=1 // pred_fallthru
      _
    %96 = vsyncpa [#allocation3], 1

</llo_original>
